<compile_context>
chip_gen: v7x
topology: tpu7x:2x2x1
jax: 0.10.0
libtpu: 0.0.40
codegen_flags: <defaults>
</compile_context>

<pallas_src>
import functools
import math

import jax
import jax.numpy as jnp
from jax.experimental import pallas as pl
from jax.experimental.pallas import tpu as pltpu


def _round_up(x, m):
    return (x + m - 1) // m * m


def _layernorm(x, w, b, eps=1e-5):
    mu = jnp.mean(x, axis=-1, keepdims=True)
    var = jnp.mean((x - mu) ** 2, axis=-1, keepdims=True)
    return (x - mu) * jax.lax.rsqrt(var + eps) * w + b


def _gelu_tanh(x):
    # TODO(synk): PyTorch nn.GELU() default is the exact erf GELU; the tanh
    # approximation is used in-kernel (erf has no guaranteed Mosaic lowering).
    c = math.sqrt(2.0 / math.pi)
    return 0.5 * x * (1.0 + jnp.tanh(c * (x + 0.044715 * x ** 3)))


# --------------------------------------------------------------------------------------
# Row-tiled linear (patch embedding)
# --------------------------------------------------------------------------------------

def _linear_kernel(x_ref, w_ref, b_ref, o_ref):
    x = x_ref[...].astype(jnp.bfloat16)                 # bf16 MXU operands
    y = jnp.dot(x, w_ref[...], preferred_element_type=jnp.float32) + b_ref[...]
    o_ref[...] = y.astype(o_ref.dtype)


def linear_rows(x2d, w, b):
    """(M, Din) @ (Din, Dout) + b with the M axis tiled into row blocks."""
    M, Din = x2d.shape
    Dout = w.shape[1]
    tr = min(128, _round_up(M, 8))
    Mp = _round_up(M, tr)
    if Mp != M:
        x2d = jnp.pad(x2d, ((0, Mp - M), (0, 0)))
    out = pl.pallas_call(
        _linear_kernel,
        out_shape=jax.ShapeDtypeStruct((Mp, Dout), jnp.float32),
        grid=(Mp // tr,),
        in_specs=[
            pl.BlockSpec((tr, Din), lambda r: (r, 0)),
            pl.BlockSpec((Din, Dout), lambda r: (0, 0)),
            pl.BlockSpec((1, Dout), lambda r: (0, 0)),
        ],
        out_specs=pl.BlockSpec((tr, Dout), lambda r: (r, 0)),
        compiler_params=pltpu.CompilerParams(
            dimension_semantics=("parallel",),
            vmem_limit_bytes=32 * 1024 * 1024),
        cost_estimate=pl.CostEstimate(
            flops=int(2 * Mp * Din * Dout), transcendentals=0,
            bytes_accessed=int(4 * Mp * (Din + Dout) + 2 * Din * Dout)),
    )(x2d, w, b)
    return out[:M]


def patch_embed(x_patches, w, b):
    B, Np, Din = x_patches.shape
    out = linear_rows(x_patches.reshape(B * Np, Din), w, b)
    return out.reshape(B, Np, w.shape[1])


# --------------------------------------------------------------------------------------
# Attention block: Residual(PreNorm(Attention)), grid = (batch, heads)
# --------------------------------------------------------------------------------------

def _attn_kernel(scale, n_real,
                 x_ref, lnw_ref, lnb_ref, wq_ref, wk_ref, wv_ref, wo_ref,
                 bo_ref, o_ref, xn_ref, acc_ref):
    h = pl.program_id(1)

    @pl.when(h == 0)
    def _init():
        x = x_ref[0].astype(jnp.float32)
        xn_ref[...] = _layernorm(x, lnw_ref[...], lnb_ref[...])    # LN once per batch elem
        acc_ref[...] = x + bo_ref[...]                             # residual + to_out bias

    xn = xn_ref[...].astype(jnp.bfloat16)
    q = jnp.dot(xn, wq_ref[0], preferred_element_type=jnp.float32)   # (Np, hd)
    k = jnp.dot(xn, wk_ref[0], preferred_element_type=jnp.float32)
    v = jnp.dot(xn, wv_ref[0], preferred_element_type=jnp.float32)

    dots = jax.lax.dot_general(
        q.astype(jnp.bfloat16), k.astype(jnp.bfloat16),
        (((1,), (1,)), ((), ())),
        preferred_element_type=jnp.float32) * scale                  # (Np, Np)

    # TODO(synk): the mask != None branch of Attention.forward is not implemented
    # (ViT forward runs with mask=None); only padded key columns are masked here.
    col = jax.lax.broadcasted_iota(jnp.int32, dots.shape, 1)
    dots = jnp.where(col < n_real, dots, -1e30)

    m = jnp.max(dots, axis=-1, keepdims=True)
    e = jnp.exp(dots - m)
    denom = jnp.sum(e, axis=-1, keepdims=True)
    attn = e * pl.reciprocal(denom, approx=True)                     # EUP slot

    ctx = jnp.dot(attn.astype(jnp.bfloat16), v.astype(jnp.bfloat16),
                  preferred_element_type=jnp.float32)                # (Np, hd)
    acc_ref[...] += jnp.dot(ctx.astype(jnp.bfloat16), wo_ref[0],
                            preferred_element_type=jnp.float32)      # ctx_h @ Wo[h]

    @pl.when(h == pl.num_programs(1) - 1)
    def _store():
        o_ref[0] = acc_ref[...].astype(o_ref.dtype)


def attention_block(x, lp, heads, scale, n_real):
    B, Npad, D = x.shape
    hd = D // heads
    kernel = functools.partial(_attn_kernel, scale, n_real)
    cost = pl.CostEstimate(
        flops=int(2 * B * Npad * D * 4 * D + 4 * B * heads * Npad * Npad * hd),
        transcendentals=int(B * heads * Npad * Npad),
        bytes_accessed=int(4 * 2 * B * Npad * D + 2 * 4 * D * D))
    return pl.pallas_call(
        kernel,
        out_shape=jax.ShapeDtypeStruct((B, Npad, D), x.dtype),
        grid=(B, heads),
        in_specs=[
            pl.BlockSpec((1, Npad, D), lambda b, h: (b, 0, 0)),   # x (resident over heads)
            pl.BlockSpec((1, D), lambda b, h: (0, 0)),            # ln1 weight
            pl.BlockSpec((1, D), lambda b, h: (0, 0)),            # ln1 bias
            pl.BlockSpec((1, D, hd), lambda b, h: (h, 0, 0)),     # w_q[h]
            pl.BlockSpec((1, D, hd), lambda b, h: (h, 0, 0)),     # w_k[h]
            pl.BlockSpec((1, D, hd), lambda b, h: (h, 0, 0)),     # w_v[h]
            pl.BlockSpec((1, hd, D), lambda b, h: (h, 0, 0)),     # w_out[h]
            pl.BlockSpec((1, D), lambda b, h: (0, 0)),            # b_out
        ],
        out_specs=pl.BlockSpec((1, Npad, D), lambda b, h: (b, 0, 0)),
        scratch_shapes=[pltpu.VMEM((Npad, D), jnp.float32),       # LN(x)
                        pltpu.VMEM((Npad, D), jnp.float32)],      # output accumulator
        compiler_params=pltpu.CompilerParams(
            dimension_semantics=("parallel", "arbitrary"),
            vmem_limit_bytes=32 * 1024 * 1024),
        cost_estimate=cost,
    )(x, lp["ln1_w"], lp["ln1_b"], lp["w_q"], lp["w_k"], lp["w_v"],
      lp["w_out"], lp["b_out"])


# --------------------------------------------------------------------------------------
# Feed-forward block: Residual(PreNorm(FeedForward)), grid = (row blocks, mlp_dim blocks)
# --------------------------------------------------------------------------------------

def _ffn_kernel(x_ref, lnw_ref, lnb_ref, w1_ref, b1_ref, w2_ref, b2_ref,
                o_ref, xn_ref, acc_ref):
    k = pl.program_id(1)

    @pl.when(k == 0)
    def _init():
        x = x_ref[...].astype(jnp.float32)
        xn_ref[...] = _layernorm(x, lnw_ref[...], lnb_ref[...])
        acc_ref[...] = x + b2_ref[...]                  # residual + final bias (once)

    h = jnp.dot(xn_ref[...].astype(jnp.bfloat16), w1_ref[...],
                preferred_element_type=jnp.float32) + b1_ref[...]
    h = jnp.maximum(h, 0.0)                             # ReLU (per hidden unit -> exact under K-tiling)
    acc_ref[...] += jnp.dot(h.astype(jnp.bfloat16), w2_ref[...],
                            preferred_element_type=jnp.float32)

    @pl.when(k == pl.num_programs(1) - 1)
    def _store():
        o_ref[...] = acc_ref[...].astype(o_ref.dtype)


def _pick_hidden_tile(Dm):
    if Dm % 128:
        return Dm
    for cand in (512, 384, 256, 128):
        if Dm % cand == 0:
            return cand
    return Dm


def ffn_block(x, lp):
    B, Npad, D = x.shape
    Dm = lp["w1"].shape[1]
    rows = B * Npad
    x2 = x.reshape(rows, D)
    tr = min(128, _round_up(rows, 8))
    Mp = _round_up(rows, tr)
    if Mp != rows:
        x2 = jnp.pad(x2, ((0, Mp - rows), (0, 0)))
    tk = _pick_hidden_tile(Dm)
    cost = pl.CostEstimate(
        flops=int(4 * Mp * D * Dm), transcendentals=0,
        bytes_accessed=int(4 * 2 * Mp * D + 2 * 2 * D * Dm))
    out = pl.pallas_call(
        _ffn_kernel,
        out_shape=jax.ShapeDtypeStruct((Mp, D), x.dtype),
        grid=(Mp // tr, Dm // tk),
        in_specs=[
            pl.BlockSpec((tr, D), lambda r, k: (r, 0)),     # x rows (resident over k)
            pl.BlockSpec((1, D), lambda r, k: (0, 0)),      # ln2 weight
            pl.BlockSpec((1, D), lambda r, k: (0, 0)),      # ln2 bias
            pl.BlockSpec((D, tk), lambda r, k: (0, k)),     # w1 column block
            pl.BlockSpec((1, tk), lambda r, k: (0, k)),     # b1 block
            pl.BlockSpec((tk, D), lambda r, k: (k, 0)),     # w2 row block
            pl.BlockSpec((1, D), lambda r, k: (0, 0)),      # b2
        ],
        out_specs=pl.BlockSpec((tr, D), lambda r, k: (r, 0)),
        scratch_shapes=[pltpu.VMEM((tr, D), jnp.float32),
                        pltpu.VMEM((tr, D), jnp.float32)],
        compiler_params=pltpu.CompilerParams(
            dimension_semantics=("parallel", "arbitrary"),
            vmem_limit_bytes=32 * 1024 * 1024),
        cost_estimate=cost,
    )(x2, lp["ln2_w"], lp["ln2_b"], lp["w1"], lp["b1"], lp["w2"], lp["b2"])
    return out[:rows].reshape(B, Npad, D)


# --------------------------------------------------------------------------------------
# MLP head
# --------------------------------------------------------------------------------------

def _mlp_head_kernel(x_ref, w1_ref, b1_ref, w2_ref, b2_ref, o_ref):
    x = x_ref[...].astype(jnp.bfloat16)
    h = jnp.dot(x, w1_ref[...], preferred_element_type=jnp.float32) + b1_ref[...]
    h = _gelu_tanh(h)
    y = jnp.dot(h.astype(jnp.bfloat16), w2_ref[...],
                preferred_element_type=jnp.float32) + b2_ref[...]
    o_ref[...] = y.astype(o_ref.dtype)


def mlp_head(x_cls, w1, b1, w2, b2):
    B = x_cls.shape[0]
    nc = w2.shape[1]
    return pl.pallas_call(
        _mlp_head_kernel,
        out_shape=jax.ShapeDtypeStruct((B, nc), x_cls.dtype),
    )(x_cls, w1, b1, w2, b2)


# --------------------------------------------------------------------------------------
# Glue (plain JAX): patch rearrange, cls/pos embedding, parameter setup
# --------------------------------------------------------------------------------------

def patchify(img, p):
    """einops 'b c (h p1) (w p2) -> b (h w) (p1 p2 c)'."""
    B, C, H, W = img.shape
    x = img.reshape(B, C, H // p, p, W // p, p)          # b c h p1 w p2
    x = x.transpose(0, 2, 4, 3, 5, 1)                    # b h w p1 p2 c
    return x.reshape(B, (H // p) * (W // p), p * p * C)


def init_params(key, *, img_size, patch_size, num_classes, dim, depth, heads,
                mlp_dim, channels):
    num_patches = (img_size // patch_size) ** 2
    patch_dim = channels * patch_size ** 2
    hd = dim // heads
    keys = iter(jax.random.split(key, 16 + 16 * depth))

    def nrm(shape, dtype=jnp.bfloat16):    # matmul weights stored bf16 (MXU operands)
        return (0.02 * jax.random.normal(next(keys), shape, jnp.float32)).astype(dtype)

    params = {
        "pos": jax.random.normal(next(keys), (1, num_patches + 1, dim), jnp.float32),
        "cls": jax.random.normal(next(keys), (1, 1, dim), jnp.float32),
        "patch_w": nrm((patch_dim, dim)),
        "patch_b": nrm((1, dim), jnp.float32),
        "head_w1": nrm((dim, mlp_dim)),
        "head_b1": nrm((1, mlp_dim), jnp.float32),
        "head_w2": nrm((mlp_dim, num_classes)),
        "head_b2": nrm((1, num_classes), jnp.float32),
        "layers": [],
    }
    for _ in range(depth):
        params["layers"].append({
            "ln1_w": jnp.ones((1, dim), jnp.float32),
            "ln1_b": jnp.zeros((1, dim), jnp.float32),
            "w_q": nrm((heads, dim, hd)),
            "w_k": nrm((heads, dim, hd)),
            "w_v": nrm((heads, dim, hd)),
            "w_out": nrm((heads, hd, dim)),
            "b_out": nrm((1, dim), jnp.float32),
            "ln2_w": jnp.ones((1, dim), jnp.float32),
            "ln2_b": jnp.zeros((1, dim), jnp.float32),
            "w1": nrm((dim, mlp_dim)),
            "b1": nrm((1, mlp_dim), jnp.float32),
            "w2": nrm((mlp_dim, dim)),
            "b2": nrm((1, dim), jnp.float32),
        })
    return params


def vit_forward(params, img, *, patch_size, dim, heads):
    B = img.shape[0]
    x = patchify(img, patch_size)                                   # (B, Np, patch_dim)
    x = patch_embed(x, params["patch_w"], params["patch_b"])        # (B, Np, dim)
    cls = jnp.broadcast_to(params["cls"], (B, 1, dim))
    x = jnp.concatenate([cls, x], axis=1) + params["pos"]           # (B, N, dim)
    n_real = x.shape[1]
    n_pad = _round_up(n_real, 8)      # sublane alignment; padded keys are masked
    if n_pad != n_real:
        x = jnp.pad(x, ((0, 0), (0, n_pad - n_real), (0, 0)))
    scale = dim ** (-0.5)             # matches the reference module (dim, not head_dim)
    for lp in params["layers"]:
        x = attention_block(x, lp, heads, scale, n_real)
        x = ffn_block(x, lp)
    x_cls = x[:, 0]
    return mlp_head(x_cls, params["head_w1"], params["head_b1"],
                    params["head_w2"], params["head_b2"])


# -------- pure-JAX reference (same math & precision policy) for a self-check --------

def ref_forward(params, img, *, patch_size, dim, heads):
    bf, f32 = jnp.bfloat16, jnp.float32
    mm = lambda a, w: jnp.dot(a.astype(bf), w, preferred_element_type=f32)
    B = img.shape[0]
    x = patchify(img, patch_size)
    x = mm(x, params["patch_w"]) + params["patch_b"]
    cls = jnp.broadcast_to(params["cls"], (B, 1, dim))
    x = jnp.concatenate([cls, x], axis=1) + params["pos"]
    scale = dim ** (-0.5)
    for lp in params["layers"]:
        xn = _layernorm(x, lp["ln1_w"], lp["ln1_b"]).astype(bf)
        q = jnp.einsum("bnd,hde->bhne", xn, lp["w_q"], preferred_element_type=f32)
        k = jnp.einsum("bnd,hde->bhne", xn, lp["w_k"], preferred_element_type=f32)
        v = jnp.einsum("bnd,hde->bhne", xn, lp["w_v"], preferred_element_type=f32)
        dots = jnp.einsum("bhne,bhme->bhnm", q.astype(bf), k.astype(bf),
                          preferred_element_type=f32) * scale
        attn = jax.nn.softmax(dots, axis=-1)
        ctx = jnp.einsum("bhnm,bhme->bhne", attn.astype(bf), v.astype(bf),
                         preferred_element_type=f32)
        out = jnp.einsum("bhne,hed->bnd", ctx.astype(bf), lp["w_out"],
                         preferred_element_type=f32)
        x = out + lp["b_out"] + x
        yn = _layernorm(x, lp["ln2_w"], lp["ln2_b"])
        h1 = jnp.maximum(mm(yn, lp["w1"]) + lp["b1"], 0.0)
        x = mm(h1, lp["w2"]) + lp["b2"] + x
    xc = x[:, 0]
    h = _gelu_tanh(mm(xc, params["head_w1"]) + params["head_b1"])
    return mm(h, params["head_w2"]) + params["head_b2"]


# --------------------------------------------------------------------------------------

if __name__ == "__main__":
    cfg = dict(img_size=16, patch_size=4, num_classes=10, dim=32, depth=2,
               heads=4, mlp_dim=64, channels=4)

    key = jax.random.PRNGKey(0)
    pkey, ikey = jax.random.split(key)
    params = init_params(pkey, **cfg)

    img = jax.random.normal(ikey, (2, cfg["channels"], cfg["img_size"],
                                   cfg["img_size"]), jnp.float32)

    out = vit_forward(params, img, patch_size=cfg["patch_size"],
                      dim=cfg["dim"], heads=cfg["heads"])
    out = jax.block_until_ready(out)

    ref = ref_forward(params, img, patch_size=cfg["patch_size"],
                      dim=cfg["dim"], heads=cfg["heads"])
    assert out.shape == (2, cfg["num_classes"])
    err = jnp.max(jnp.abs(out - ref))
    assert jnp.allclose(out, ref, atol=5e-3, rtol=5e-2), f"max abs diff {err}"

    print("KERNEL_OK")
</pallas_src>

<mosaic_0001>
module attributes {stable_mosaic.version = 11 : i64} {
  func.func @_linear_kernel(%arg0: i32, %arg1: memref<32x64xf32, #tpu.memory_space<vmem>>, %arg2: memref<64x32xbf16, #tpu.memory_space<vmem>>, %arg3: memref<1x32xf32, #tpu.memory_space<vmem>>, %arg4: memref<32x32xf32, #tpu.memory_space<vmem>>) attributes {dimension_semantics = [#tpu.dimension_semantics<parallel>], iteration_bounds = array<i64: 1>, scalar_prefetch = 0 : i64, scratch_operands = 0 : i64, tpu.core_type = #tpu.core_type<tc>, window_params = [{transform_indices = @transform_0, window_bounds = array<i64: 32, 64>}, {pipeline_mode = #tpu.pipeline_mode<synchronous>, transform_indices = @transform_1, window_bounds = array<i64: 64, 32>}, {pipeline_mode = #tpu.pipeline_mode<synchronous>, transform_indices = @transform_2, window_bounds = array<i64: 1, 32>}, {transform_indices = @transform_3, window_bounds = array<i64: 32, 32>}]} {
    %c0 = arith.constant 0 : index
    %c0_0 = arith.constant 0 : index
    %0 = vector.load %arg1[%c0, %c0_0] : memref<32x64xf32, #tpu.memory_space<vmem>>, vector<32x64xf32>
    %1 = arith.truncf %0 : vector<32x64xf32> to vector<32x64xbf16>
    %c0_1 = arith.constant 0 : index
    %c0_2 = arith.constant 0 : index
    %2 = vector.load %arg2[%c0_1, %c0_2] : memref<64x32xbf16, #tpu.memory_space<vmem>>, vector<64x32xbf16>
    %cst = arith.constant dense<0.000000e+00> : vector<32x32xf32>
    %3 = tpu.matmul %1, %2, %cst {dimension_numbers = #tpu.dot_dimension_numbers<[1], [0], [0], [1], [0, 0, 1, 1], [], []>} : vector<32x64xbf16>, vector<64x32xbf16>, vector<32x32xf32> -> vector<32x32xf32>
    %c0_3 = arith.constant 0 : index
    %c0_4 = arith.constant 0 : index
    %4 = vector.load %arg3[%c0_3, %c0_4] : memref<1x32xf32, #tpu.memory_space<vmem>>, vector<1x32xf32>
    %5 = vector.broadcast %4 : vector<1x32xf32> to vector<32x32xf32>
    %6 = arith.addf %3, %5 : vector<32x32xf32>
    %c0_5 = arith.constant 0 : index
    %c0_6 = arith.constant 0 : index
    %7 = vector.load %arg4[%c0_5, %c0_6] : memref<32x32xf32, #tpu.memory_space<vmem>>, vector<32x32xf32>
    tpu.vector_store %arg4[%c0_5, %c0_6], %6 {strides = array<i32>} : memref<32x32xf32, #tpu.memory_space<vmem>>, vector<32x32xf32>,
    return
  }
  func.func @transform_0(%arg0: i32) -> (i32, i32) {
    %c0_i32 = arith.constant 0 : i32
    %c0_i32_0 = arith.constant 0 : i32
    return %arg0, %c0_i32 : i32, i32
  }
  func.func @transform_1(%arg0: i32) -> (i32, i32) {
    %c0_i32 = arith.constant 0 : i32
    %c0_i32_0 = arith.constant 0 : i32
    %c0_i32_1 = arith.constant 0 : i32
    return %c0_i32, %c0_i32_0 : i32, i32
  }
  func.func @transform_2(%arg0: i32) -> (i32, i32) {
    %c0_i32 = arith.constant 0 : i32
    %c0_i32_0 = arith.constant 0 : i32
    %c0_i32_1 = arith.constant 0 : i32
    return %c0_i32, %c0_i32_0 : i32, i32
  }
  func.func @transform_3(%arg0: i32) -> (i32, i32) {
    %c0_i32 = arith.constant 0 : i32
    %c0_i32_0 = arith.constant 0 : i32
    return %arg0, %c0_i32 : i32, i32
  }
}

</mosaic_0001>

<llo_original>
// kernel: tpu_custom_call.1
$region0: #{tpu_custom_call.1}
  #allocation0 [shape = 'u32[]', space=smem, size = 0x4, offset = 0x4, fixed_abs, tag = 'smem constant byte address 0x4 - core index']
  #allocation1 [shape = 'u32[144,128]{1,0:T(1,128)}', space=vmem, size = 0x12000, scoped, tag = 'internal scratch']
  %s0 = inlined_call_operand.vmem [shape: f32[32,64], index: 0, kind: input, shape index: {}]
  %s1 = inlined_call_operand.vmem [shape: bf16[64,32], index: 1, kind: input, shape index: {}]
  %s2 = inlined_call_operand.vmem [shape: f32[1,32], index: 2, kind: input, shape index: {}]
  %s3 = inlined_call_operand.hbm [shape: f32[32,32], index: 3, kind: output, shape index: {}]
  %s4 = sld [smem:[#allocation0]]
  $region22: #{tpu_custom_call.1} parent=0
    _
  %s6 = ssub.s32 1, %s4
  %s7 = scalar_select 0, %s6, %s4
  $region1: #{tpu_custom_call.1} parent=0
    #allocation2 [shape = 'u8[16384]{0}', space=vmem, size = 0x4000, scoped, tag = 'output window, operand 0, single buffered']
    #allocation3 [shape = 's32[1]{0}', space=sflag, size = 0x4, scoped, tag = 'scoped memory for tpu_custom_call.1']
    %8 = vsyncpa [#allocation3], 0
    // Predicated region
    $region2: #{tpu_custom_call.1} parent=1 // pred_check
      _
    $region3: #{tpu_custom_call.1} parent=1 // pred_check_branch
      %10 = sbr.rel (0) target = $region5
    $region4: #{tpu_custom_call.1} parent=1 // pred_region
      _
    $region5: #{tpu_custom_call.1} parent=1 // pred_fallthru
      _
    // Predicated region
    $region6: #{tpu_custom_call.1} parent=1 // pred_check
      _
    $region7: #{tpu_custom_call.1} parent=1 // pred_check_branch
      %12 = sbr.rel (0) target = $region9
    $region8: #{tpu_custom_call.1} parent=1 // pred_region
      _
    $region9: #{tpu_custom_call.1} parent=1 // pred_fallthru
      _
    // Predicated region
    $region10: #{tpu_custom_call.1} parent=1 // pred_check
      _
    $region11: #{tpu_custom_call.1} parent=1 // pred_check_branch
      %14 = sbr.rel (0) target = $region13
    $region12: #{tpu_custom_call.1} parent=1 // pred_region
      _
    $region13: #{tpu_custom_call.1} parent=1 // pred_fallthru
      _
    %v16 = vld [vmem:[%s0] sm:$0xff]
    %v17 = vld [vmem:[%s0 + $0x8] sm:$0xff]
    %v18 = vld [vmem:[%s0 + $0x10] sm:$0xff]
    %v19 = vld [vmem:[%s0 + $0x18] sm:$0xff]
    %v20 = vpack.c.bf16 %v17, %v16
    %v21 = vpack.c.bf16 %v19, %v18
    %v22 = vld [vmem:[%s1] sm:$0xf]
    %v23 = vld [vmem:[%s1 + $0x4] sm:$0xf]
    %v24 = vld [vmem:[%s1 + $0x8] sm:$0xf]
    %v25 = vld [vmem:[%s1 + $0xc] sm:$0xf]
    %v26 = vld [vmem:[%s1 + $0x10] sm:$0xf]
    %v27 = vld [vmem:[%s1 + $0x14] sm:$0xf]
    %v28 = vld [vmem:[%s1 + $0x18] sm:$0xf]
    %v29 = vld [vmem:[%s1 + $0x1c] sm:$0xf]
    %v30 = vld [vmem:[%s2] sm:$0x1]
    %v32 = vlaneseq
    %v33 = vshrl.u32 %v32, 7
    %v34 = vsub.s32 0, %v33
    %v35 = vrot.slane %v30, %v34
    %v45 = vunpack.c.l.b16 %v22
    %v46 = vunpack.c.l.b16 %v23
    %v47 = vunpack.c.l.b16 %v24
    %v48 = vunpack.c.l.b16 %v25
    %v49 = vunpack.c.l.b16 %v26
    %v50 = vunpack.c.l.b16 %v27
    %v51 = vunpack.c.l.b16 %v28
    %v52 = vunpack.c.l.b16 %v29
    %v53 = vpack.c.b16 %v46, %v45
    %v54 = vpack.c.b16 %v48, %v47
    %v55 = vpack.c.b16 %v50, %v49
    %v56 = vpack.c.b16 %v52, %v51
    %vm61 = vcmask 523264
    %v63 = vsel %vm61, %v20, 0
    %v66 = vsel %vm61, %v21, 0
    %68 = vmatprep.subr.bf16.mxu0 0
    %69 = vmatpush1.bf16.msra.mxu0 %v53
    %70 = vmatprep.subr.bf16.mxu0 0
    %71 = vmatpush1.bf16.msra.mxu0 %v54
    %72 = vmatprep.subr.bf16.mxu0 0
    %73 = vmatpush1.bf16.msra.mxu0 %v55
    %74 = vmatprep.subr.bf16.mxu0 0
    %75 = vmatpush1.bf16.msra.mxu0 %v56
    %76 = vmatprep.subr.bf16.mxu0 0
    %77 = vmatpush1.bf16.msra.mxu0 0
    %78 = vmatprep.subr.bf16.mxu0 0
    %79 = vmatpush1.bf16.msra.mxu0 0
    %80 = vmatprep.subr.bf16.mxu0 0
    %81 = vmatpush1.bf16.msra.mxu0 0
    %82 = vmatprep.subr.bf16.mxu0 0
    %83 = vmatpush1.bf16.msra.mxu0 0
    %84 = vmatprep.subr.bf16.mxu0 0
    %85 = vmatpush1.bf16.msra.mxu0 0
    %86 = vmatprep.subr.bf16.mxu0 0
    %87 = vmatpush1.bf16.msra.mxu0 0
    %88 = vmatprep.subr.bf16.mxu0 0
    %89 = vmatpush1.bf16.msra.mxu0 0
    %90 = vmatprep.subr.bf16.mxu0 0
    %91 = vmatpush1.bf16.msra.mxu0 0
    %92 = vmatprep.subr.bf16.mxu0 0
    %93 = vmatpush1.bf16.msra.mxu0 0
    %94 = vmatprep.subr.bf16.mxu0 0
    %95 = vmatpush1.bf16.msra.mxu0 0
    %96 = vmatprep.subr.bf16.mxu0 0
    %97 = vmatpush1.bf16.msra.mxu0 0
    %98 = vmatprep.subr.bf16.mxu0 0
    %99 = vmatpush1.bf16.msra.mxu0 0
    %100 = vmatprep.mubr.bf16.mxu0 0
    %101 = vmatmul.mubr.bf16.gmra.mrb[0].mxu0 %v63
    %v102 = vpop.f32.mrb[0].mxu0
    %v103 = vadd.f32 %v35, %v102
    %v104 = vpop.f32.mrb[0].mxu0
    %v105 = vpop.f32.mrb[0].mxu0
    %v106 = vadd.f32 %v35, %v105
    %v107 = vpop.f32.mrb[0].mxu0
    %108 = vmatprep.mubr.bf16.mxu0 0
    %109 = vmatmul.mubr.bf16.gmra.mrb[0].mxu0 %v66
    %v110 = vpop.f32.mrb[0].mxu0
    %v111 = vadd.f32 %v35, %v110
    %v112 = vpop.f32.mrb[0].mxu0
    %v113 = vpop.f32.mrb[0].mxu0
    %v114 = vadd.f32 %v35, %v113
    %v115 = vpop.f32.mrb[0].mxu0
    %116 = vdwg.mxu0
    %vm117 = vcmask 261120
    %118 = vst.msk [vmem:[#allocation2] sm:$0xff] %vm117, %v103
    %119 = vst.msk [vmem:[#allocation2 + $0x8] sm:$0xff] %vm117, %v106
    %120 = vst.msk [vmem:[#allocation2 + $0x10] sm:$0xff] %vm117, %v111
    %121 = vst.msk [vmem:[#allocation2 + $0x18] sm:$0xff] %vm117, %v114
    // Predicated region
    $region14: #{tpu_custom_call.1} parent=1 // pred_check
      _
    $region15: #{tpu_custom_call.1} parent=1 // pred_check_branch
      %123 = sbr.rel (0) target = $region17
    $region16: #{tpu_custom_call.1} parent=1 // pred_region
      %s125 = ssub.s32 512, 512
      %126 = vsyncadd [#allocation3], %s125
      %s127 = sshll.u32 [#allocation2], 4
      %s128 = int_to_ptr.vmem [resolvable:$true] %s127
      %133 = dma.vmem_to_hbm [thread:$0]  %s128, 512, %s3, [#allocation3], 128, 128, 8
    $region17: #{tpu_custom_call.1} parent=1 // pred_fallthru
      _
    // Predicated region
    $region18: #{tpu_custom_call.1} parent=1 // pred_check
      _
    $region19: #{tpu_custom_call.1} parent=1 // pred_check_branch
      %135 = sbr.rel (0) target = $region21
    $region20: #{tpu_custom_call.1} parent=1 // pred_region
      %136 = dma.done [#allocation3], 512
    $region21: #{tpu_custom_call.1} parent=1 // pred_fallthru
      _
    %137 = vsyncpa [#allocation3], 1

</llo_original>
